<compile_context>
chip_gen: v7x
topology: tpu7x:2x2x1
jax: 0.10.0
libtpu: 0.0.40
codegen_flags: <defaults>
</compile_context>

<pallas_src>
import jax
import jax.numpy as jnp
import numpy as np
from jax.experimental import pallas as pl
from jax.experimental.pallas import tpu as pltpu


def lstm_kernel(x_ref, wih_ref, whh_ref, b_ref, wfc_ref, bfc_ref, out_ref):
    """Whole-sequence LSTM + FC head in one kernel invocation.

    x_ref   : (T*B, I)  t-major input rows, fully resident in VMEM
    wih_ref : (I, 4H)   W_ih^T, i/f/o columns pre-scaled by 0.5 (sigmoid-as-tanh)
    whh_ref : (H, 4H)   W_hh^T, i/f/o columns pre-scaled by 0.5 (unpadded, stationary)
    b_ref   : (1, 4H)   b_ih + b_hh, i/f/o entries pre-scaled by 0.5
    wfc_ref : (1, H)    FC weight row
    bfc_ref : (1, 1)    FC bias
    out_ref : (B, 1)
    """
    TB, _ = x_ref.shape
    G = b_ref.shape[1]            # 4H  (== 128 lanes at H=32)
    H = G // 4
    B = out_ref.shape[0]
    T = TB // B

    # ---- Phase 1: input projections for ALL T steps in ONE MXU matmul
    # (bias and the sigmoid 0.5 pre-scale are already folded into wih/b).
    preact = (jnp.dot(x_ref[...], wih_ref[...], preferred_element_type=jnp.float32)
              + b_ref[...]).reshape(T, B, G)     # t-major: preact[t] is one (8,128) vreg

    whh = whh_ref[...]            # (H, 4H): 4 stationary vregs reused by all T-1 matmuls

    # Lane-constant vregs turning y = tanh(gates) into [i | f | g | o]:
    #   i/f/o lanes: sigmoid(z) = 0.5*tanh(z/2) + 0.5  (the /2 was folded wrapper-side)
    #   g lanes    : tanh(z)    = y
    lane = jax.lax.broadcasted_iota(jnp.int32, (B, G), 1)
    is_g = (lane >= 2 * H) & (lane < 3 * H)
    gate_scale = jnp.where(is_g, 1.0, 0.5).astype(jnp.float32)
    gate_shift = jnp.where(is_g, 0.0, 0.5).astype(jnp.float32)

    def cell(gates, c_prev):
        """One LSTM cell update from pre-activations; c_prev=None means h=c=0 (t=0)."""
        y = jnp.tanh(gates)                       # single EUP pass for all four gates
        act = y * gate_scale + gate_shift         # VPU blend -> [i | f | g | o]
        g_al = pltpu.roll(act, G - 2 * H, 1)      # g block aligned onto lanes [0, H)
        o_al = pltpu.roll(act, G - 3 * H, 1)      # o block aligned onto lanes [0, H)
        ig = act[:, :H] * g_al[:, :H]             # i is already on lanes [0, H)
        if c_prev is None:
            c = ig                                # t = 0: f * c_prev term is exactly 0
        else:
            f_al = pltpu.roll(act, G - H, 1)      # f block aligned onto lanes [0, H)
            c = f_al[:, :H] * c_prev + ig
        h = o_al[:, :H] * jnp.tanh(c)             # second (and last) EUP pass of the step
        return h, c

    # ---- Phase 2: recurrence fully unrolled over the small static T; t = 0 peeled.
    h, c = cell(preact[0], None)
    for t in range(1, T):
        gates = preact[t] + jnp.dot(h, whh, preferred_element_type=jnp.float32)
        h, c = cell(gates, c)

    # ---- FC head Linear(H, 1): VPU multiply + lane reduction (not an N=1 MXU matmul).
    out_ref[...] = (jnp.sum(h * wfc_ref[...], axis=-1, keepdims=True) + bfc_ref[...])


def lstm_model_forward(x, params):
    """x: (B, T, I) float32, batch-first (same as the PyTorch module).  Returns (B, 1)."""
    B, T, I = x.shape
    H = params["w_hh"].shape[1]
    G = 4 * H

    # sigmoid(z) = 0.5*tanh(z/2) + 0.5: fold the 0.5 pre-scale into the i/f/o gate rows
    # (PyTorch gate order i, f, g, o) so the kernel runs ONE tanh pass per step.
    gate_idx = np.arange(G)
    col_scale = jnp.asarray(
        np.where((gate_idx >= 2 * H) & (gate_idx < 3 * H), 1.0, 0.5), jnp.float32)

    w_ih_t = (params["w_ih"] * col_scale[:, None]).T          # (I, 4H)
    w_hh_t = (params["w_hh"] * col_scale[:, None]).T          # (H, 4H), unpadded
    b = ((params["b_ih"] + params["b_hh"]) * col_scale).reshape(1, G)
    w_fc = params["w_fc"].reshape(1, H)
    b_fc = params["b_fc"].reshape(1, 1)

    # t-major input slab so preact[t] is a contiguous (B, 4H) vreg slice in the kernel
    # (one-time ~4 KiB transpose; keeps the in-loop XLU slots free for the rolls).
    x_tb = jnp.transpose(x, (1, 0, 2)).reshape(T * B, I)

    cost = pl.CostEstimate(
        flops=2 * B * T * I * G + 2 * B * H * G * (T - 1) + 12 * B * G * T,
        transcendentals=B * G * T + B * H * T,
        bytes_accessed=4 * (B * T * I + I * G + H * G + G + H + 1 + B),
    )

    vmem = pltpu.MemorySpace.VMEM
    return pl.pallas_call(
        lstm_kernel,
        out_shape=jax.ShapeDtypeStruct((B, 1), jnp.float32),
        in_specs=[pl.BlockSpec(memory_space=vmem) for _ in range(6)],
        out_specs=pl.BlockSpec(memory_space=vmem),
        cost_estimate=cost,
        compiler_params=pltpu.CompilerParams(vmem_limit_bytes=16 * 1024 * 1024),
    )(x_tb, w_ih_t, w_hh_t, b, w_fc, b_fc)


def lstm_model_ref(x, params):
    """Pure-JAX reference mirroring torch.nn.LSTM(batch_first=True) + nn.Linear forward."""
    B, T, I = x.shape
    H = params["w_hh"].shape[1]
    w_ih, w_hh = params["w_ih"], params["w_hh"]
    b = params["b_ih"] + params["b_hh"]
    hi = jax.lax.Precision.HIGHEST   # true-f32 matmuls so the 1e-5-scale check is meaningful

    def step(carry, x_t):
        h, c = carry
        gates = (jnp.dot(x_t, w_ih.T, precision=hi)
                 + jnp.dot(h, w_hh.T, precision=hi) + b)
        i = jax.nn.sigmoid(gates[:, 0:H])
        f = jax.nn.sigmoid(gates[:, H:2 * H])
        g = jnp.tanh(gates[:, 2 * H:3 * H])
        o = jax.nn.sigmoid(gates[:, 3 * H:4 * H])
        c = f * c + i * g
        h = o * jnp.tanh(c)
        return (h, c), None

    h0 = jnp.zeros((B, H), jnp.float32)
    c0 = jnp.zeros((B, H), jnp.float32)
    (h, _), _ = jax.lax.scan(step, (h0, c0), jnp.transpose(x, (1, 0, 2)))
    return jnp.dot(h, params["w_fc"].T, precision=hi) + params["b_fc"]


def init_params(key, input_size, hidden_size):
    """Deterministic init matching PyTorch shapes (uniform(-1/sqrt(H), 1/sqrt(H)))."""
    k = 1.0 / np.sqrt(hidden_size)
    ks = jax.random.split(key, 6)
    u = lambda kk, shape: jax.random.uniform(kk, shape, jnp.float32, -k, k)
    return {
        "w_ih": u(ks[0], (4 * hidden_size, input_size)),
        "w_hh": u(ks[1], (4 * hidden_size, hidden_size)),
        "b_ih": u(ks[2], (4 * hidden_size,)),
        "b_hh": u(ks[3], (4 * hidden_size,)),
        "w_fc": u(ks[4], (1, hidden_size)),
        "b_fc": u(ks[5], (1,)),
    }


if __name__ == "__main__":
    B, T, I, H = 8, 8, 16, 32
    key = jax.random.PRNGKey(0)
    kx, kp = jax.random.split(key)
    x = jax.random.normal(kx, (B, T, I), jnp.float32)
    params = init_params(kp, I, H)

    out = lstm_model_forward(x, params)
    out = jax.block_until_ready(out)

    ref = lstm_model_ref(x, params)
    np.testing.assert_allclose(np.asarray(out), np.asarray(ref), rtol=1e-5, atol=2e-5)

    print("KERNEL_OK")
</pallas_src>

<mosaic_0001>
module attributes {stable_mosaic.version = 11 : i64} {
  func.func @lstm_kernel(%arg0: memref<64x16xf32, #tpu.memory_space<vmem>>, %arg1: memref<16x128xf32, #tpu.memory_space<vmem>>, %arg2: memref<32x128xf32, #tpu.memory_space<vmem>>, %arg3: memref<1x128xf32, #tpu.memory_space<vmem>>, %arg4: memref<1x32xf32, #tpu.memory_space<vmem>>, %arg5: memref<1x1xf32, #tpu.memory_space<vmem>>, %arg6: memref<8x1xf32, #tpu.memory_space<vmem>>) attributes {dimension_semantics = [], scalar_prefetch = 0 : i64, scratch_operands = 0 : i64, tpu.core_type = #tpu.core_type<tc>} {
    %c0 = arith.constant 0 : index
    %c0_0 = arith.constant 0 : index
    %0 = vector.load %arg0[%c0, %c0_0] : memref<64x16xf32, #tpu.memory_space<vmem>>, vector<64x16xf32>
    %c0_1 = arith.constant 0 : index
    %c0_2 = arith.constant 0 : index
    %1 = vector.load %arg1[%c0_1, %c0_2] : memref<16x128xf32, #tpu.memory_space<vmem>>, vector<16x128xf32>
    %cst = arith.constant dense<0.000000e+00> : vector<64x128xf32>
    %2 = tpu.matmul %0, %1, %cst {dimension_numbers = #tpu.dot_dimension_numbers<[1], [0], [0], [1], [0, 0, 1, 1], [], []>} : vector<64x16xf32>, vector<16x128xf32>, vector<64x128xf32> -> vector<64x128xf32>
    %c0_3 = arith.constant 0 : index
    %c0_4 = arith.constant 0 : index
    %3 = vector.load %arg3[%c0_3, %c0_4] : memref<1x128xf32, #tpu.memory_space<vmem>>, vector<1x128xf32>
    %4 = vector.broadcast %3 : vector<1x128xf32> to vector<64x128xf32>
    %5 = arith.addf %2, %4 : vector<64x128xf32>
    %6 = vector.shape_cast %5 : vector<64x128xf32> to vector<8x8x128xf32>
    %c0_5 = arith.constant 0 : index
    %c0_6 = arith.constant 0 : index
    %7 = vector.load %arg2[%c0_5, %c0_6] : memref<32x128xf32, #tpu.memory_space<vmem>>, vector<32x128xf32>
    %8 = tpu.iota {dimensions = array<i32: 1>} : vector<8x128xi32>
    %c64_i32 = arith.constant 64 : i32
    %9 = vector.broadcast %c64_i32 : i32 to vector<8x128xi32>
    %10 = arith.cmpi sge, %8, %9 : vector<8x128xi32>
    %c96_i32 = arith.constant 96 : i32
    %11 = vector.broadcast %c96_i32 : i32 to vector<8x128xi32>
    %12 = arith.cmpi slt, %8, %11 : vector<8x128xi32>
    %13 = arith.andi %10, %12 : vector<8x128xi1>
    %cst_7 = arith.constant 1.000000e+00 : f32
    %cst_8 = arith.constant 5.000000e-01 : f32
    %14 = vector.broadcast %cst_7 : f32 to vector<8x128xf32>
    %15 = vector.broadcast %cst_8 : f32 to vector<8x128xf32>
    %16 = arith.select %13, %14, %15 : vector<8x128xi1>, vector<8x128xf32>
    %cst_9 = arith.constant 0.000000e+00 : f32
    %cst_10 = arith.constant 5.000000e-01 : f32
    %17 = vector.broadcast %cst_9 : f32 to vector<8x128xf32>
    %18 = vector.broadcast %cst_10 : f32 to vector<8x128xf32>
    %19 = arith.select %13, %17, %18 : vector<8x128xi1>, vector<8x128xf32>
    %20 = vector.extract_strided_slice %6 {offsets = [0, 0, 0], sizes = [1, 8, 128], strides = [1, 1, 1]} : vector<8x8x128xf32> to vector<1x8x128xf32>
    %21 = vector.shape_cast %20 : vector<1x8x128xf32> to vector<8x128xf32>
    %22 = math.tanh %21 : vector<8x128xf32>
    %23 = arith.mulf %22, %16 : vector<8x128xf32>
    %24 = arith.addf %23, %19 : vector<8x128xf32>
    %c64_i32_11 = arith.constant 64 : i32
    %25 = tpu.dynamic_rotate %24 by %c64_i32_11 dim 1 : vector<8x128xf32>, i32 -> vector<8x128xf32>
    %c32_i32 = arith.constant 32 : i32
    %26 = tpu.dynamic_rotate %24 by %c32_i32 dim 1 : vector<8x128xf32>, i32 -> vector<8x128xf32>
    %27 = vector.extract_strided_slice %24 {offsets = [0, 0], sizes = [8, 32], strides = [1, 1]} : vector<8x128xf32> to vector<8x32xf32>
    %28 = vector.extract_strided_slice %25 {offsets = [0, 0], sizes = [8, 32], strides = [1, 1]} : vector<8x128xf32> to vector<8x32xf32>
    %29 = arith.mulf %27, %28 : vector<8x32xf32>
    %30 = vector.extract_strided_slice %26 {offsets = [0, 0], sizes = [8, 32], strides = [1, 1]} : vector<8x128xf32> to vector<8x32xf32>
    %31 = math.tanh %29 : vector<8x32xf32>
    %32 = arith.mulf %30, %31 : vector<8x32xf32>
    %33 = vector.extract_strided_slice %6 {offsets = [1, 0, 0], sizes = [1, 8, 128], strides = [1, 1, 1]} : vector<8x8x128xf32> to vector<1x8x128xf32>
    %34 = vector.shape_cast %33 : vector<1x8x128xf32> to vector<8x128xf32>
    %cst_12 = arith.constant dense<0.000000e+00> : vector<8x128xf32>
    %35 = tpu.matmul %32, %7, %cst_12 {dimension_numbers = #tpu.dot_dimension_numbers<[1], [0], [0], [1], [0, 0, 1, 1], [], []>} : vector<8x32xf32>, vector<32x128xf32>, vector<8x128xf32> -> vector<8x128xf32>
    %36 = arith.addf %34, %35 : vector<8x128xf32>
    %37 = math.tanh %36 : vector<8x128xf32>
    %38 = arith.mulf %37, %16 : vector<8x128xf32>
    %39 = arith.addf %38, %19 : vector<8x128xf32>
    %c64_i32_13 = arith.constant 64 : i32
    %40 = tpu.dynamic_rotate %39 by %c64_i32_13 dim 1 : vector<8x128xf32>, i32 -> vector<8x128xf32>
    %c32_i32_14 = arith.constant 32 : i32
    %41 = tpu.dynamic_rotate %39 by %c32_i32_14 dim 1 : vector<8x128xf32>, i32 -> vector<8x128xf32>
    %42 = vector.extract_strided_slice %39 {offsets = [0, 0], sizes = [8, 32], strides = [1, 1]} : vector<8x128xf32> to vector<8x32xf32>
    %43 = vector.extract_strided_slice %40 {offsets = [0, 0], sizes = [8, 32], strides = [1, 1]} : vector<8x128xf32> to vector<8x32xf32>
    %44 = arith.mulf %42, %43 : vector<8x32xf32>
    %c96_i32_15 = arith.constant 96 : i32
    %45 = tpu.dynamic_rotate %39 by %c96_i32_15 dim 1 : vector<8x128xf32>, i32 -> vector<8x128xf32>
    %46 = vector.extract_strided_slice %45 {offsets = [0, 0], sizes = [8, 32], strides = [1, 1]} : vector<8x128xf32> to vector<8x32xf32>
    %47 = arith.mulf %46, %29 : vector<8x32xf32>
    %48 = arith.addf %47, %44 : vector<8x32xf32>
    %49 = vector.extract_strided_slice %41 {offsets = [0, 0], sizes = [8, 32], strides = [1, 1]} : vector<8x128xf32> to vector<8x32xf32>
    %50 = math.tanh %48 : vector<8x32xf32>
    %51 = arith.mulf %49, %50 : vector<8x32xf32>
    %52 = vector.extract_strided_slice %6 {offsets = [2, 0, 0], sizes = [1, 8, 128], strides = [1, 1, 1]} : vector<8x8x128xf32> to vector<1x8x128xf32>
    %53 = vector.shape_cast %52 : vector<1x8x128xf32> to vector<8x128xf32>
    %cst_16 = arith.constant dense<0.000000e+00> : vector<8x128xf32>
    %54 = tpu.matmul %51, %7, %cst_16 {dimension_numbers = #tpu.dot_dimension_numbers<[1], [0], [0], [1], [0, 0, 1, 1], [], []>} : vector<8x32xf32>, vector<32x128xf32>, vector<8x128xf32> -> vector<8x128xf32>
    %55 = arith.addf %53, %54 : vector<8x128xf32>
    %56 = math.tanh %55 : vector<8x128xf32>
    %57 = arith.mulf %56, %16 : vector<8x128xf32>
    %58 = arith.addf %57, %19 : vector<8x128xf32>
    %c64_i32_17 = arith.constant 64 : i32
    %59 = tpu.dynamic_rotate %58 by %c64_i32_17 dim 1 : vector<8x128xf32>, i32 -> vector<8x128xf32>
    %c32_i32_18 = arith.constant 32 : i32
    %60 = tpu.dynamic_rotate %58 by %c32_i32_18 dim 1 : vector<8x128xf32>, i32 -> vector<8x128xf32>
    %61 = vector.extract_strided_slice %58 {offsets = [0, 0], sizes = [8, 32], strides = [1, 1]} : vector<8x128xf32> to vector<8x32xf32>
    %62 = vector.extract_strided_slice %59 {offsets = [0, 0], sizes = [8, 32], strides = [1, 1]} : vector<8x128xf32> to vector<8x32xf32>
    %63 = arith.mulf %61, %62 : vector<8x32xf32>
    %c96_i32_19 = arith.constant 96 : i32
    %64 = tpu.dynamic_rotate %58 by %c96_i32_19 dim 1 : vector<8x128xf32>, i32 -> vector<8x128xf32>
    %65 = vector.extract_strided_slice %64 {offsets = [0, 0], sizes = [8, 32], strides = [1, 1]} : vector<8x128xf32> to vector<8x32xf32>
    %66 = arith.mulf %65, %48 : vector<8x32xf32>
    %67 = arith.addf %66, %63 : vector<8x32xf32>
    %68 = vector.extract_strided_slice %60 {offsets = [0, 0], sizes = [8, 32], strides = [1, 1]} : vector<8x128xf32> to vector<8x32xf32>
    %69 = math.tanh %67 : vector<8x32xf32>
    %70 = arith.mulf %68, %69 : vector<8x32xf32>
    %71 = vector.extract_strided_slice %6 {offsets = [3, 0, 0], sizes = [1, 8, 128], strides = [1, 1, 1]} : vector<8x8x128xf32> to vector<1x8x128xf32>
    %72 = vector.shape_cast %71 : vector<1x8x128xf32> to vector<8x128xf32>
    %cst_20 = arith.constant dense<0.000000e+00> : vector<8x128xf32>
    %73 = tpu.matmul %70, %7, %cst_20 {dimension_numbers = #tpu.dot_dimension_numbers<[1], [0], [0], [1], [0, 0, 1, 1], [], []>} : vector<8x32xf32>, vector<32x128xf32>, vector<8x128xf32> -> vector<8x128xf32>
    %74 = arith.addf %72, %73 : vector<8x128xf32>
    %75 = math.tanh %74 : vector<8x128xf32>
    %76 = arith.mulf %75, %16 : vector<8x128xf32>
    %77 = arith.addf %76, %19 : vector<8x128xf32>
    %c64_i32_21 = arith.constant 64 : i32
    %78 = tpu.dynamic_rotate %77 by %c64_i32_21 dim 1 : vector<8x128xf32>, i32 -> vector<8x128xf32>
    %c32_i32_22 = arith.constant 32 : i32
    %79 = tpu.dynamic_rotate %77 by %c32_i32_22 dim 1 : vector<8x128xf32>, i32 -> vector<8x128xf32>
    %80 = vector.extract_strided_slice %77 {offsets = [0, 0], sizes = [8, 32], strides = [1, 1]} : vector<8x128xf32> to vector<8x32xf32>
    %81 = vector.extract_strided_slice %78 {offsets = [0, 0], sizes = [8, 32], strides = [1, 1]} : vector<8x128xf32> to vector<8x32xf32>
    %82 = arith.mulf %80, %81 : vector<8x32xf32>
    %c96_i32_23 = arith.constant 96 : i32
    %83 = tpu.dynamic_rotate %77 by %c96_i32_23 dim 1 : vector<8x128xf32>, i32 -> vector<8x128xf32>
    %84 = vector.extract_strided_slice %83 {offsets = [0, 0], sizes = [8, 32], strides = [1, 1]} : vector<8x128xf32> to vector<8x32xf32>
    %85 = arith.mulf %84, %67 : vector<8x32xf32>
    %86 = arith.addf %85, %82 : vector<8x32xf32>
    %87 = vector.extract_strided_slice %79 {offsets = [0, 0], sizes = [8, 32], strides = [1, 1]} : vector<8x128xf32> to vector<8x32xf32>
    %88 = math.tanh %86 : vector<8x32xf32>
    %89 = arith.mulf %87, %88 : vector<8x32xf32>
    %90 = vector.extract_strided_slice %6 {offsets = [4, 0, 0], sizes = [1, 8, 128], strides = [1, 1, 1]} : vector<8x8x128xf32> to vector<1x8x128xf32>
    %91 = vector.shape_cast %90 : vector<1x8x128xf32> to vector<8x128xf32>
    %cst_24 = arith.constant dense<0.000000e+00> : vector<8x128xf32>
    %92 = tpu.matmul %89, %7, %cst_24 {dimension_numbers = #tpu.dot_dimension_numbers<[1], [0], [0], [1], [0, 0, 1, 1], [], []>} : vector<8x32xf32>, vector<32x128xf32>, vector<8x128xf32> -> vector<8x128xf32>
    %93 = arith.addf %91, %92 : vector<8x128xf32>
    %94 = math.tanh %93 : vector<8x128xf32>
    %95 = arith.mulf %94, %16 : vector<8x128xf32>
    %96 = arith.addf %95, %19 : vector<8x128xf32>
    %c64_i32_25 = arith.constant 64 : i32
    %97 = tpu.dynamic_rotate %96 by %c64_i32_25 dim 1 : vector<8x128xf32>, i32 -> vector<8x128xf32>
    %c32_i32_26 = arith.constant 32 : i32
    %98 = tpu.dynamic_rotate %96 by %c32_i32_26 dim 1 : vector<8x128xf32>, i32 -> vector<8x128xf32>
    %99 = vector.extract_strided_slice %96 {offsets = [0, 0], sizes = [8, 32], strides = [1, 1]} : vector<8x128xf32> to vector<8x32xf32>
    %100 = vector.extract_strided_slice %97 {offsets = [0, 0], sizes = [8, 32], strides = [1, 1]} : vector<8x128xf32> to vector<8x32xf32>
    %101 = arith.mulf %99, %100 : vector<8x32xf32>
    %c96_i32_27 = arith.constant 96 : i32
    %102 = tpu.dynamic_rotate %96 by %c96_i32_27 dim 1 : vector<8x128xf32>, i32 -> vector<8x128xf32>
    %103 = vector.extract_strided_slice %102 {offsets = [0, 0], sizes = [8, 32], strides = [1, 1]} : vector<8x128xf32> to vector<8x32xf32>
    %104 = arith.mulf %103, %86 : vector<8x32xf32>
    %105 = arith.addf %104, %101 : vector<8x32xf32>
    %106 = vector.extract_strided_slice %98 {offsets = [0, 0], sizes = [8, 32], strides = [1, 1]} : vector<8x128xf32> to vector<8x32xf32>
    %107 = math.tanh %105 : vector<8x32xf32>
    %108 = arith.mulf %106, %107 : vector<8x32xf32>
    %109 = vector.extract_strided_slice %6 {offsets = [5, 0, 0], sizes = [1, 8, 128], strides = [1, 1, 1]} : vector<8x8x128xf32> to vector<1x8x128xf32>
    %110 = vector.shape_cast %109 : vector<1x8x128xf32> to vector<8x128xf32>
    %cst_28 = arith.constant dense<0.000000e+00> : vector<8x128xf32>
    %111 = tpu.matmul %108, %7, %cst_28 {dimension_numbers = #tpu.dot_dimension_numbers<[1], [0], [0], [1], [0, 0, 1, 1], [], []>} : vector<8x32xf32>, vector<32x128xf32>, vector<8x128xf32> -> vector<8x128xf32>
    %112 = arith.addf %110, %111 : vector<8x128xf32>
    %113 = math.tanh %112 : vector<8x128xf32>
    %114 = arith.mulf %113, %16 : vector<8x128xf32>
    %115 = arith.addf %114, %19 : vector<8x128xf32>
    %c64_i32_29 = arith.constant 64 : i32
    %116 = tpu.dynamic_rotate %115 by %c64_i32_29 dim 1 : vector<8x128xf32>, i32 -> vector<8x128xf32>
    %c32_i32_30 = arith.constant 32 : i32
    %117 = tpu.dynamic_rotate %115 by %c32_i32_30 dim 1 : vector<8x128xf32>, i32 -> vector<8x128xf32>
    %118 = vector.extract_strided_slice %115 {offsets = [0, 0], sizes = [8, 32], strides = [1, 1]} : vector<8x128xf32> to vector<8x32xf32>
    %119 = vector.extract_strided_slice %116 {offsets = [0, 0], sizes = [8, 32], strides = [1, 1]} : vector<8x128xf32> to vector<8x32xf32>
    %120 = arith.mulf %118, %119 : vector<8x32xf32>
    %c96_i32_31 = arith.constant 96 : i32
    %121 = tpu.dynamic_rotate %115 by %c96_i32_31 dim 1 : vector<8x128xf32>, i32 -> vector<8x128xf32>
    %122 = vector.extract_strided_slice %121 {offsets = [0, 0], sizes = [8, 32], strides = [1, 1]} : vector<8x128xf32> to vector<8x32xf32>
    %123 = arith.mulf %122, %105 : vector<8x32xf32>
    %124 = arith.addf %123, %120 : vector<8x32xf32>
    %125 = vector.extract_strided_slice %117 {offsets = [0, 0], sizes = [8, 32], strides = [1, 1]} : vector<8x128xf32> to vector<8x32xf32>
    %126 = math.tanh %124 : vector<8x32xf32>
    %127 = arith.mulf %125, %126 : vector<8x32xf32>
    %128 = vector.extract_strided_slice %6 {offsets = [6, 0, 0], sizes = [1, 8, 128], strides = [1, 1, 1]} : vector<8x8x128xf32> to vector<1x8x128xf32>
    %129 = vector.shape_cast %128 : vector<1x8x128xf32> to vector<8x128xf32>
    %cst_32 = arith.constant dense<0.000000e+00> : vector<8x128xf32>
    %130 = tpu.matmul %127, %7, %cst_32 {dimension_numbers = #tpu.dot_dimension_numbers<[1], [0], [0], [1], [0, 0, 1, 1], [], []>} : vector<8x32xf32>, vector<32x128xf32>, vector<8x128xf32> -> vector<8x128xf32>
    %131 = arith.addf %129, %130 : vector<8x128xf32>
    %132 = math.tanh %131 : vector<8x128xf32>
    %133 = arith.mulf %132, %16 : vector<8x128xf32>
    %134 = arith.addf %133, %19 : vector<8x128xf32>
    %c64_i32_33 = arith.constant 64 : i32
    %135 = tpu.dynamic_rotate %134 by %c64_i32_33 dim 1 : vector<8x128xf32>, i32 -> vector<8x128xf32>
    %c32_i32_34 = arith.constant 32 : i32
    %136 = tpu.dynamic_rotate %134 by %c32_i32_34 dim 1 : vector<8x128xf32>, i32 -> vector<8x128xf32>
    %137 = vector.extract_strided_slice %134 {offsets = [0, 0], sizes = [8, 32], strides = [1, 1]} : vector<8x128xf32> to vector<8x32xf32>
    %138 = vector.extract_strided_slice %135 {offsets = [0, 0], sizes = [8, 32], strides = [1, 1]} : vector<8x128xf32> to vector<8x32xf32>
    %139 = arith.mulf %137, %138 : vector<8x32xf32>
    %c96_i32_35 = arith.constant 96 : i32
    %140 = tpu.dynamic_rotate %134 by %c96_i32_35 dim 1 : vector<8x128xf32>, i32 -> vector<8x128xf32>
    %141 = vector.extract_strided_slice %140 {offsets = [0, 0], sizes = [8, 32], strides = [1, 1]} : vector<8x128xf32> to vector<8x32xf32>
    %142 = arith.mulf %141, %124 : vector<8x32xf32>
    %143 = arith.addf %142, %139 : vector<8x32xf32>
    %144 = vector.extract_strided_slice %136 {offsets = [0, 0], sizes = [8, 32], strides = [1, 1]} : vector<8x128xf32> to vector<8x32xf32>
    %145 = math.tanh %143 : vector<8x32xf32>
    %146 = arith.mulf %144, %145 : vector<8x32xf32>
    %147 = vector.extract_strided_slice %6 {offsets = [7, 0, 0], sizes = [1, 8, 128], strides = [1, 1, 1]} : vector<8x8x128xf32> to vector<1x8x128xf32>
    %148 = vector.shape_cast %147 : vector<1x8x128xf32> to vector<8x128xf32>
    %cst_36 = arith.constant dense<0.000000e+00> : vector<8x128xf32>
    %149 = tpu.matmul %146, %7, %cst_36 {dimension_numbers = #tpu.dot_dimension_numbers<[1], [0], [0], [1], [0, 0, 1, 1], [], []>} : vector<8x32xf32>, vector<32x128xf32>, vector<8x128xf32> -> vector<8x128xf32>
    %150 = arith.addf %148, %149 : vector<8x128xf32>
    %151 = math.tanh %150 : vector<8x128xf32>
    %152 = arith.mulf %151, %16 : vector<8x128xf32>
    %153 = arith.addf %152, %19 : vector<8x128xf32>
    %c64_i32_37 = arith.constant 64 : i32
    %154 = tpu.dynamic_rotate %153 by %c64_i32_37 dim 1 : vector<8x128xf32>, i32 -> vector<8x128xf32>
    %c32_i32_38 = arith.constant 32 : i32
    %155 = tpu.dynamic_rotate %153 by %c32_i32_38 dim 1 : vector<8x128xf32>, i32 -> vector<8x128xf32>
    %156 = vector.extract_strided_slice %153 {offsets = [0, 0], sizes = [8, 32], strides = [1, 1]} : vector<8x128xf32> to vector<8x32xf32>
    %157 = vector.extract_strided_slice %154 {offsets = [0, 0], sizes = [8, 32], strides = [1, 1]} : vector<8x128xf32> to vector<8x32xf32>
    %158 = arith.mulf %156, %157 : vector<8x32xf32>
    %c96_i32_39 = arith.constant 96 : i32
    %159 = tpu.dynamic_rotate %153 by %c96_i32_39 dim 1 : vector<8x128xf32>, i32 -> vector<8x128xf32>
    %160 = vector.extract_strided_slice %159 {offsets = [0, 0], sizes = [8, 32], strides = [1, 1]} : vector<8x128xf32> to vector<8x32xf32>
    %161 = arith.mulf %160, %143 : vector<8x32xf32>
    %162 = arith.addf %161, %158 : vector<8x32xf32>
    %163 = vector.extract_strided_slice %155 {offsets = [0, 0], sizes = [8, 32], strides = [1, 1]} : vector<8x128xf32> to vector<8x32xf32>
    %164 = math.tanh %162 : vector<8x32xf32>
    %165 = arith.mulf %163, %164 : vector<8x32xf32>
    %c0_40 = arith.constant 0 : index
    %c0_41 = arith.constant 0 : index
    %166 = vector.load %arg4[%c0_40, %c0_41] : memref<1x32xf32, #tpu.memory_space<vmem>>, vector<1x32xf32>
    %167 = vector.broadcast %166 : vector<1x32xf32> to vector<8x32xf32>
    %168 = arith.mulf %165, %167 : vector<8x32xf32>
    %cst_42 = arith.constant dense<0.000000e+00> : vector<8xf32>
    %169 = vector.multi_reduction <add>, %168, %cst_42 [1] : vector<8x32xf32> to vector<8xf32>
    %170 = vector.shape_cast %169 : vector<8xf32> to vector<8x1xf32>
    %c0_43 = arith.constant 0 : index
    %c0_44 = arith.constant 0 : index
    %171 = vector.load %arg5[%c0_43, %c0_44] : memref<1x1xf32, #tpu.memory_space<vmem>>, vector<1x1xf32>
    %172 = vector.broadcast %171 : vector<1x1xf32> to vector<8x1xf32>
    %173 = arith.addf %170, %172 : vector<8x1xf32>
    %c0_45 = arith.constant 0 : index
    %c0_46 = arith.constant 0 : index
    %174 = vector.load %arg6[%c0_45, %c0_46] : memref<8x1xf32, #tpu.memory_space<vmem>>, vector<8x1xf32>
    tpu.vector_store %arg6[%c0_45, %c0_46], %173 {strides = array<i32>} : memref<8x1xf32, #tpu.memory_space<vmem>>, vector<8x1xf32>,
    return
  }
}

</mosaic_0001>

<llo_original>
// kernel: tpu_custom_call.1
$region0: #{tpu_custom_call.1}
  #allocation0 [shape = 'u32[]', space=smem, size = 0x4, offset = 0x4, fixed_abs, tag = 'smem constant byte address 0x4 - core index']
  #allocation1 [shape = 'u32[144,128]{1,0:T(1,128)}', space=vmem, size = 0x12000, scoped, tag = 'internal scratch']
  #allocation2 [shape = 'f32[1,1]{1,0:T(1,128)S(1)}', space=vmem, size = 0x200, scoped, tag = 'scoped memory for tpu_custom_call.1']
  %s0 = inlined_call_operand.vmem [shape: f32[64,16], index: 0, kind: input, shape index: {}]
  %s1 = inlined_call_operand.vmem [shape: f32[16,128], index: 1, kind: input, shape index: {}]
  %s2 = inlined_call_operand.vmem [shape: f32[32,128], index: 2, kind: input, shape index: {}]
  %s3 = inlined_call_operand.vmem [shape: f32[1,128], index: 3, kind: input, shape index: {}]
  %s4 = inlined_call_operand.vmem [shape: f32[1,32], index: 4, kind: input, shape index: {}]
  %s5 = inlined_call_operand.<no memory space> [shape: f32[1,1], index: 5, kind: input, shape index: {}]
  %s6 = inlined_call_operand.vmem [shape: f32[8,1], index: 6, kind: output, shape index: {}]
  %s7 = sld [smem:[#allocation0]]
  $region34: #{tpu_custom_call.1} parent=0
    _
  %s9 = ssub.s32 1, %s7
  %s10 = scalar_select 0, %s9, %s7
  %v11 = vstv %s5
  %12 = vst [vmem:[#allocation2] sm:$0x1] %v11
  // Predicated region
  $region2: #{tpu_custom_call.1} parent=0 // pred_check
    _
  $region3: #{tpu_custom_call.1} parent=0 // pred_check_branch
    %14 = sbr.rel (0) target = $region5
  $region4: #{tpu_custom_call.1} parent=0 // pred_region
    _
  $region5: #{tpu_custom_call.1} parent=0 // pred_fallthru
    _
  // Predicated region
  $region6: #{tpu_custom_call.1} parent=0 // pred_check
    _
  $region7: #{tpu_custom_call.1} parent=0 // pred_check_branch
    %16 = sbr.rel (0) target = $region9
  $region8: #{tpu_custom_call.1} parent=0 // pred_region
    _
  $region9: #{tpu_custom_call.1} parent=0 // pred_fallthru
    _
  // Predicated region
  $region10: #{tpu_custom_call.1} parent=0 // pred_check
    _
  $region11: #{tpu_custom_call.1} parent=0 // pred_check_branch
    %18 = sbr.rel (0) target = $region13
  $region12: #{tpu_custom_call.1} parent=0 // pred_region
    _
  $region13: #{tpu_custom_call.1} parent=0 // pred_fallthru
    _
  // Predicated region
  $region14: #{tpu_custom_call.1} parent=0 // pred_check
    _
  $region15: #{tpu_custom_call.1} parent=0 // pred_check_branch
    %20 = sbr.rel (0) target = $region17
  $region16: #{tpu_custom_call.1} parent=0 // pred_region
    _
  $region17: #{tpu_custom_call.1} parent=0 // pred_fallthru
    _
  // Predicated region
  $region18: #{tpu_custom_call.1} parent=0 // pred_check
    _
  $region19: #{tpu_custom_call.1} parent=0 // pred_check_branch
    %22 = sbr.rel (0) target = $region21
  $region20: #{tpu_custom_call.1} parent=0 // pred_region
    _
  $region21: #{tpu_custom_call.1} parent=0 // pred_fallthru
    _
  // Predicated region
  $region22: #{tpu_custom_call.1} parent=0 // pred_check
    _
  $region23: #{tpu_custom_call.1} parent=0 // pred_check_branch
    %24 = sbr.rel (0) target = $region25
  $region24: #{tpu_custom_call.1} parent=0 // pred_region
    _
  $region25: #{tpu_custom_call.1} parent=0 // pred_fallthru
    _
  %v25 = vld [vmem:[%s0] sm:$0xff]
  %v26 = vld [vmem:[%s0 + $0x8] sm:$0xff]
  %v27 = vld [vmem:[%s0 + $0x10] sm:$0xff]
  %v28 = vld [vmem:[%s0 + $0x18] sm:$0xff]
  %v29 = vld [vmem:[%s0 + $0x20] sm:$0xff]
  %v30 = vld [vmem:[%s0 + $0x28] sm:$0xff]
  %v31 = vld [vmem:[%s0 + $0x30] sm:$0xff]
  %v32 = vld [vmem:[%s0 + $0x38] sm:$0xff]
  %v33 = vld [vmem:[%s1] sm:$0xff]
  %v34 = vld [vmem:[%s1 + $0x8] sm:$0xff]
  %v35 = vld [vmem:[%s3] sm:$0x1]
  %v37 = vlaneseq
  %v38 = vshrl.u32 %v37, 7
  %v39 = vsub.s32 0, %v38
  %v40 = vrot.slane %v35, %v39
  %vm42 = vcmask 130048
  %v44 = vsel %vm42, %v25, 0
  %v47 = vsel %vm42, %v26, 0
  %v50 = vsel %vm42, %v27, 0
  %v53 = vsel %vm42, %v28, 0
  %v56 = vsel %vm42, %v29, 0
  %v59 = vsel %vm42, %v30, 0
  %v62 = vsel %vm42, %v31, 0
  %v65 = vsel %vm42, %v32, 0
  %67 = vmatprep.subr.mxu0 0.0
  %68 = vmatpush1.msra.mxu0 %v33
  %69 = vmatprep.subr.mxu0 0.0
  %70 = vmatpush1.msra.mxu0 %v34
  %71 = vmatprep.subr.mxu0 0.0
  %72 = vmatpush1.msra.mxu0 0.0
  %73 = vmatprep.subr.mxu0 0.0
  %74 = vmatpush1.msra.mxu0 0.0
  %75 = vmatprep.subr.mxu0 0.0
  %76 = vmatpush1.msra.mxu0 0.0
  %77 = vmatprep.subr.mxu0 0.0
  %78 = vmatpush1.msra.mxu0 0.0
  %79 = vmatprep.subr.mxu0 0.0
  %80 = vmatpush1.msra.mxu0 0.0
  %81 = vmatprep.subr.mxu0 0.0
  %82 = vmatpush1.msra.mxu0 0.0
  %83 = vmatprep.subr.mxu0 0.0
  %84 = vmatpush1.msra.mxu0 0.0
  %85 = vmatprep.subr.mxu0 0.0
  %86 = vmatpush1.msra.mxu0 0.0
  %87 = vmatprep.subr.mxu0 0.0
  %88 = vmatpush1.msra.mxu0 0.0
  %89 = vmatprep.subr.mxu0 0.0
  %90 = vmatpush1.msra.mxu0 0.0
  %91 = vmatprep.subr.mxu0 0.0
  %92 = vmatpush1.msra.mxu0 0.0
  %93 = vmatprep.subr.mxu0 0.0
  %94 = vmatpush1.msra.mxu0 0.0
  %95 = vmatprep.subr.mxu0 0.0
  %96 = vmatpush1.msra.mxu0 0.0
  %97 = vmatprep.subr.mxu0 0.0
  %98 = vmatpush1.msra.mxu0 0.0
  %99 = vmatprep.subr.mxu0 0.0
  %100 = vmatpush1.msra.mxu0 0.0
  %101 = vmatprep.subr.mxu0 0.0
  %102 = vmatpush1.msra.mxu0 0.0
  %103 = vmatprep.subr.mxu0 0.0
  %104 = vmatpush1.msra.mxu0 0.0
  %105 = vmatprep.subr.mxu0 0.0
  %106 = vmatpush1.msra.mxu0 0.0
  %107 = vmatprep.subr.mxu0 0.0
  %108 = vmatpush1.msra.mxu0 0.0
  %109 = vmatprep.subr.mxu0 0.0
  %110 = vmatpush1.msra.mxu0 0.0
  %111 = vmatprep.subr.mxu0 0.0
  %112 = vmatpush1.msra.mxu0 0.0
  %113 = vmatprep.subr.mxu0 0.0
  %114 = vmatpush1.msra.mxu0 0.0
  %115 = vmatprep.subr.mxu0 0.0
  %116 = vmatpush1.msra.mxu0 0.0
  %117 = vmatprep.subr.mxu0 0.0
  %118 = vmatpush1.msra.mxu0 0.0
  %119 = vmatprep.subr.mxu0 0.0
  %120 = vmatpush1.msra.mxu0 0.0
  %121 = vmatprep.subr.mxu0 0.0
  %122 = vmatpush1.msra.mxu0 0.0
  %123 = vmatprep.subr.mxu0 0.0
  %124 = vmatpush1.msra.mxu0 0.0
  %125 = vmatprep.subr.mxu0 0.0
  %126 = vmatpush1.msra.mxu0 0.0
  %127 = vmatprep.subr.mxu0 0.0
  %128 = vmatpush1.msra.mxu0 0.0
  %129 = vmatprep.subr.mxu0 0.0
  %130 = vmatpush1.msra.mxu0 0.0
  %131 = vmatprep.mubr.f32.mxu0 0.0
  %132 = vmatmul.mubr.f32.gmra.mrb[0].mxu0 %v44
  %v133 = vpop.f32.mrb[0].mxu0
  %v134 = vadd.f32 %v40, %v133
  %v135 = vpop.f32.mrb[0].mxu0
  %136 = vmatprep.mubr.f32.mxu0 0.0
  %137 = vmatmul.mubr.f32.gmra.mrb[0].mxu0 %v47
  %v138 = vpop.f32.mrb[0].mxu0
  %v139 = vadd.f32 %v40, %v138
  %v140 = vpop.f32.mrb[0].mxu0
  %141 = vmatprep.mubr.f32.mxu0 0.0
  %142 = vmatmul.mubr.f32.gmra.mrb[0].mxu0 %v50
  %v143 = vpop.f32.mrb[0].mxu0
  %v144 = vadd.f32 %v40, %v143
  %v145 = vpop.f32.mrb[0].mxu0
  %146 = vmatprep.mubr.f32.mxu0 0.0
  %147 = vmatmul.mubr.f32.gmra.mrb[0].mxu0 %v53
  %v148 = vpop.f32.mrb[0].mxu0
  %v149 = vadd.f32 %v40, %v148
  %v150 = vpop.f32.mrb[0].mxu0
  %151 = vmatprep.mubr.f32.mxu0 0.0
  %152 = vmatmul.mubr.f32.gmra.mrb[0].mxu0 %v56
  %v153 = vpop.f32.mrb[0].mxu0
  %v154 = vadd.f32 %v40, %v153
  %v155 = vpop.f32.mrb[0].mxu0
  %156 = vmatprep.mubr.f32.mxu0 0.0
  %157 = vmatmul.mubr.f32.gmra.mrb[0].mxu0 %v59
  %v158 = vpop.f32.mrb[0].mxu0
  %v159 = vadd.f32 %v40, %v158
  %v160 = vpop.f32.mrb[0].mxu0
  %161 = vmatprep.mubr.f32.mxu0 0.0
  %162 = vmatmul.mubr.f32.gmra.mrb[0].mxu0 %v62
  %v163 = vpop.f32.mrb[0].mxu0
  %v164 = vadd.f32 %v40, %v163
  %v165 = vpop.f32.mrb[0].mxu0
  %166 = vmatprep.mubr.f32.mxu0 0.0
  %167 = vmatmul.mubr.f32.gmra.mrb[0].mxu0 %v65
  %v168 = vpop.f32.mrb[0].mxu0
  %v169 = vadd.f32 %v40, %v168
  %v170 = vpop.f32.mrb[0].mxu0
  %171 = vdwg.mxu0
  %v172 = vld [vmem:[%s2] sm:$0xff]
  %v173 = vld [vmem:[%s2 + $0x8] sm:$0xff]
  %v174 = vld [vmem:[%s2 + $0x10] sm:$0xff]
  %v175 = vld [vmem:[%s2 + $0x18] sm:$0xff]
  %v176 = vlaneseq
  %v177 = vand.u32 %v176, 127
  %vm178 = vcmp.ge.s32.totalorder %v177, 64
  %vm179 = vcmp.lt.s32.totalorder %v177, 96
  %vm180 = vmand %vm178, %vm179
  %v181 = vsel %vm180, 1.0, 0.5
  %v182 = vsel %vm180, 0.0, 0.5
  %v183 = vtanh.pop %v134
  %v184 = vmul.f32 %v183, %v181
  %v185 = vadd.f32 %v184, %v182
  %186 = vrot.lane.b32.xlu0 %v185, 64
  %v187 = vpop.permute.xlu0 %186
  %188 = vrot.lane.b32.xlu0 %v185, 32
  %v189 = vpop.permute.xlu0 %188
  %v190 = vmul.f32 %v185, %v187
  %v191 = vtanh.pop %v190
  %v192 = vmul.f32 %v189, %v191
  %vm193 = vcmask 261120
  %v195 = vsel %vm193, %v192, 0
  %197 = vmatprep.subr.mxu0 0.0
  %198 = vmatpush1.msra.mxu0 %v172
  %199 = vmatprep.subr.mxu0 0.0
  %200 = vmatpush1.msra.mxu0 %v173
  %201 = vmatprep.subr.mxu0 0.0
  %202 = vmatpush1.msra.mxu0 %v174
  %203 = vmatprep.subr.mxu0 0.0
  %204 = vmatpush1.msra.mxu0 %v175
  %205 = vmatprep.subr.mxu0 0.0
  %206 = vmatpush1.msra.mxu0 0.0
  %207 = vmatprep.subr.mxu0 0.0
  %208 = vmatpush1.msra.mxu0 0.0
  %209 = vmatprep.subr.mxu0 0.0
  %210 = vmatpush1.msra.mxu0 0.0
  %211 = vmatprep.subr.mxu0 0.0
  %212 = vmatpush1.msra.mxu0 0.0
  %213 = vmatprep.subr.mxu0 0.0
  %214 = vmatpush1.msra.mxu0 0.0
  %215 = vmatprep.subr.mxu0 0.0
  %216 = vmatpush1.msra.mxu0 0.0
  %217 = vmatprep.subr.mxu0 0.0
  %218 = vmatpush1.msra.mxu0 0.0
  %219 = vmatprep.subr.mxu0 0.0
  %220 = vmatpush1.msra.mxu0 0.0
  %221 = vmatprep.subr.mxu0 0.0
  %222 = vmatpush1.msra.mxu0 0.0
  %223 = vmatprep.subr.mxu0 0.0
  %224 = vmatpush1.msra.mxu0 0.0
  %225 = vmatprep.subr.mxu0 0.0
  %226 = vmatpush1.msra.mxu0 0.0
  %227 = vmatprep.subr.mxu0 0.0
  %228 = vmatpush1.msra.mxu0 0.0
  %229 = vmatprep.subr.mxu0 0.0
  %230 = vmatpush1.msra.mxu0 0.0
  %231 = vmatprep.subr.mxu0 0.0
  %232 = vmatpush1.msra.mxu0 0.0
  %233 = vmatprep.subr.mxu0 0.0
  %234 = vmatpush1.msra.mxu0 0.0
  %235 = vmatprep.subr.mxu0 0.0
  %236 = vmatpush1.msra.mxu0 0.0
  %237 = vmatprep.subr.mxu0 0.0
  %238 = vmatpush1.msra.mxu0 0.0
  %239 = vmatprep.subr.mxu0 0.0
  %240 = vmatpush1.msra.mxu0 0.0
  %241 = vmatprep.subr.mxu0 0.0
  %242 = vmatpush1.msra.mxu0 0.0
  %243 = vmatprep.subr.mxu0 0.0
  %244 = vmatpush1.msra.mxu0 0.0
  %245 = vmatprep.subr.mxu0 0.0
  %246 = vmatpush1.msra.mxu0 0.0
  %247 = vmatprep.subr.mxu0 0.0
  %248 = vmatpush1.msra.mxu0 0.0
  %249 = vmatprep.subr.mxu0 0.0
  %250 = vmatpush1.msra.mxu0 0.0
  %251 = vmatprep.subr.mxu0 0.0
  %252 = vmatpush1.msra.mxu0 0.0
  %253 = vmatprep.subr.mxu0 0.0
  %254 = vmatpush1.msra.mxu0 0.0
  %255 = vmatprep.subr.mxu0 0.0
  %256 = vmatpush1.msra.mxu0 0.0
  %257 = vmatprep.subr.mxu0 0.0
  %258 = vmatpush1.msra.mxu0 0.0
  %259 = vmatprep.subr.mxu0 0.0
  %260 = vmatpush1.msra.mxu0 0.0
  %261 = vmatprep.mubr.f32.mxu0 0.0
  %262 = vmatmul.mubr.f32.gmra.mrb[0].mxu0 %v195
  %v263 = vpop.f32.mrb[0].mxu0
  %v264 = vadd.f32 0.0, %v263
  %v265 = vpop.f32.mrb[0].mxu0
  %266 = vdwg.mxu0
  %v267 = vadd.f32 %v139, %v264
  %v268 = vtanh.pop %v267
  %v269 = vmul.f32 %v268, %v181
  %v270 = vadd.f32 %v269, %v182
  %271 = vrot.lane.b32.xlu0 %v270, 64
  %v272 = vpop.permute.xlu0 %271
  %273 = vrot.lane.b32.xlu0 %v270, 32
  %v274 = vpop.permute.xlu0 %273
  %v275 = vmul.f32 %v270, %v272
  %276 = vrot.lane.b32.xlu0 %v270, 96
  %v277 = vpop.permute.xlu0 %276
  %v278 = vmul.f32 %v277, %v190
  %v279 = vadd.f32 %v278, %v275
  %v280 = vtanh.pop %v279
  %v281 = vmul.f32 %v274, %v280
  %v283 = vsel %vm193, %v281, 0
  %285 = vmatprep.subr.mxu0 0.0
  %286 = vmatpush1.msra.mxu0 %v172
  %287 = vmatprep.subr.mxu0 0.0
  %288 = vmatpush1.msra.mxu0 %v173
  %289 = vmatprep.subr.mxu0 0.0
  %290 = vmatpush1.msra.mxu0 %v174
  %291 = vmatprep.subr.mxu0 0.0
  %292 = vmatpush1.msra.mxu0 %v175
  %293 = vmatprep.subr.mxu0 0.0
  %294 = vmatpush1.msra.mxu0 0.0
  %295 = vmatprep.subr.mxu0 0.0
  %296 = vmatpush1.msra.mxu0 0.0
  %297 = vmatprep.subr.mxu0 0.0
  %298 = vmatpush1.msra.mxu0 0.0
  %299 = vmatprep.subr.mxu0 0.0
  %300 = vmatpush1.msra.mxu0 0.0
  %301 = vmatprep.subr.mxu0 0.0
  %302 = vmatpush1.msra.mxu0 0.0
  %303 = vmatprep.subr.mxu0 0.0
  %304 = vmatpush1.msra.mxu0 0.0
  %305 = vmatprep.subr.mxu0 0.0
  %306 = vmatpush1.msra.mxu0 0.0
  %307 = vmatprep.subr.mxu0 0.0
  %308 = vmatpush1.msra.mxu0 0.0
  %309 = vmatprep.subr.mxu0 0.0
  %310 = vmatpush1.msra.mxu0 0.0
  %311 = vmatprep.subr.mxu0 0.0
  %312 = vmatpush1.msra.mxu0 0.0
  %313 = vmatprep.subr.mxu0 0.0
  %314 = vmatpush1.msra.mxu0 0.0
  %315 = vmatprep.subr.mxu0 0.0
  %316 = vmatpush1.msra.mxu0 0.0
  %317 = vmatprep.subr.mxu0 0.0
  %318 = vmatpush1.msra.mxu0 0.0
  %319 = vmatprep.subr.mxu0 0.0
  %320 = vmatpush1.msra.mxu0 0.0
  %321 = vmatprep.subr.mxu0 0.0
  %322 = vmatpush1.msra.mxu0 0.0
  %323 = vmatprep.subr.mxu0 0.0
  %324 = vmatpush1.msra.mxu0 0.0
  %325 = vmatprep.subr.mxu0 0.0
  %326 = vmatpush1.msra.mxu0 0.0
  %327 = vmatprep.subr.mxu0 0.0
  %328 = vmatpush1.msra.mxu0 0.0
  %329 = vmatprep.subr.mxu0 0.0
  %330 = vmatpush1.msra.mxu0 0.0
  %331 = vmatprep.subr.mxu0 0.0
  %332 = vmatpush1.msra.mxu0 0.0
  %333 = vmatprep.subr.mxu0 0.0
  %334 = vmatpush1.msra.mxu0 0.0
  %335 = vmatprep.subr.mxu0 0.0
  %336 = vmatpush1.msra.mxu0 0.0
  %337 = vmatprep.subr.mxu0 0.0
  %338 = vmatpush1.msra.mxu0 0.0
  %339 = vmatprep.subr.mxu0 0.0
  %340 = vmatpush1.msra.mxu0 0.0
  %341 = vmatprep.subr.mxu0 0.0
  %342 = vmatpush1.msra.mxu0 0.0
  %343 = vmatprep.subr.mxu0 0.0
  %344 = vmatpush1.msra.mxu0 0.0
  %345 = vmatprep.subr.mxu0 0.0
  %346 = vmatpush1.msra.mxu0 0.0
  %347 = vmatprep.subr.mxu0 0.0
  %348 = vmatpush1.msra.mxu0 0.0
  %349 = vmatprep.mubr.f32.mxu0 0.0
  %350 = vmatmul.mubr.f32.gmra.mrb[0].mxu0 %v283
  %v351 = vpop.f32.mrb[0].mxu0
  %v352 = vadd.f32 0.0, %v351
  %v353 = vpop.f32.mrb[0].mxu0
  %354 = vdwg.mxu0
  %v355 = vadd.f32 %v144, %v352
  %v356 = vtanh.pop %v355
  %v357 = vmul.f32 %v356, %v181
  %v358 = vadd.f32 %v357, %v182
  %359 = vrot.lane.b32.xlu0 %v358, 64
  %v360 = vpop.permute.xlu0 %359
  %361 = vrot.lane.b32.xlu0 %v358, 32
  %v362 = vpop.permute.xlu0 %361
  %v363 = vmul.f32 %v358, %v360
  %364 = vrot.lane.b32.xlu0 %v358, 96
  %v365 = vpop.permute.xlu0 %364
  %v366 = vmul.f32 %v365, %v279
  %v367 = vadd.f32 %v366, %v363
  %v368 = vtanh.pop %v367
  %v369 = vmul.f32 %v362, %v368
  %v371 = vsel %vm193, %v369, 0
  %373 = vmatprep.subr.mxu0 0.0
  %374 = vmatpush1.msra.mxu0 %v172
  %375 = vmatprep.subr.mxu0 0.0
  %376 = vmatpush1.msra.mxu0 %v173
  %377 = vmatprep.subr.mxu0 0.0
  %378 = vmatpush1.msra.mxu0 %v174
  %379 = vmatprep.subr.mxu0 0.0
  %380 = vmatpush1.msra.mxu0 %v175
  %381 = vmatprep.subr.mxu0 0.0
  %382 = vmatpush1.msra.mxu0 0.0
  %383 = vmatprep.subr.mxu0 0.0
  %384 = vmatpush1.msra.mxu0 0.0
  %385 = vmatprep.subr.mxu0 0.0
  %386 = vmatpush1.msra.mxu0 0.0
  %387 = vmatprep.subr.mxu0 0.0
  %388 = vmatpush1.msra.mxu0 0.0
  %389 = vmatprep.subr.mxu0 0.0
  %390 = vmatpush1.msra.mxu0 0.0
  %391 = vmatprep.subr.mxu0 0.0
  %392 = vmatpush1.msra.mxu0 0.0
  %393 = vmatprep.subr.mxu0 0.0
  %394 = vmatpush1.msra.mxu0 0.0
  %395 = vmatprep.subr.mxu0 0.0
  %396 = vmatpush1.msra.mxu0 0.0
  %397 = vmatprep.subr.mxu0 0.0
  %398 = vmatpush1.msra.mxu0 0.0
  %399 = vmatprep.subr.mxu0 0.0
  %400 = vmatpush1.msra.mxu0 0.0
  %401 = vmatprep.subr.mxu0 0.0
  %402 = vmatpush1.msra.mxu0 0.0
  %403 = vmatprep.subr.mxu0 0.0
  %404 = vmatpush1.msra.mxu0 0.0
  %405 = vmatprep.subr.mxu0 0.0
  %406 = vmatpush1.msra.mxu0 0.0
  %407 = vmatprep.subr.mxu0 0.0
  %408 = vmatpush1.msra.mxu0 0.0
  %409 = vmatprep.subr.mxu0 0.0
  %410 = vmatpush1.msra.mxu0 0.0
  %411 = vmatprep.subr.mxu0 0.0
  %412 = vmatpush1.msra.mxu0 0.0
  %413 = vmatprep.subr.mxu0 0.0
  %414 = vmatpush1.msra.mxu0 0.0
  %415 = vmatprep.subr.mxu0 0.0
  %416 = vmatpush1.msra.mxu0 0.0
  %417 = vmatprep.subr.mxu0 0.0
  %418 = vmatpush1.msra.mxu0 0.0
  %419 = vmatprep.subr.mxu0 0.0
  %420 = vmatpush1.msra.mxu0 0.0
  %421 = vmatprep.subr.mxu0 0.0
  %422 = vmatpush1.msra.mxu0 0.0
  %423 = vmatprep.subr.mxu0 0.0
  %424 = vmatpush1.msra.mxu0 0.0
  %425 = vmatprep.subr.mxu0 0.0
  %426 = vmatpush1.msra.mxu0 0.0
  %427 = vmatprep.subr.mxu0 0.0
  %428 = vmatpush1.msra.mxu0 0.0
  %429 = vmatprep.subr.mxu0 0.0
  %430 = vmatpush1.msra.mxu0 0.0
  %431 = vmatprep.subr.mxu0 0.0
  %432 = vmatpush1.msra.mxu0 0.0
  %433 = vmatprep.subr.mxu0 0.0
  %434 = vmatpush1.msra.mxu0 0.0
  %435 = vmatprep.subr.mxu0 0.0
  %436 = vmatpush1.msra.mxu0 0.0
  %437 = vmatprep.mubr.f32.mxu0 0.0
  %438 = vmatmul.mubr.f32.gmra.mrb[0].mxu0 %v371
  %v439 = vpop.f32.mrb[0].mxu0
  %v440 = vadd.f32 0.0, %v439
  %v441 = vpop.f32.mrb[0].mxu0
  %442 = vdwg.mxu0
  %v443 = vadd.f32 %v149, %v440
  %v444 = vtanh.pop %v443
  %v445 = vmul.f32 %v444, %v181
  %v446 = vadd.f32 %v445, %v182
  %447 = vrot.lane.b32.xlu0 %v446, 64
  %v448 = vpop.permute.xlu0 %447
  %449 = vrot.lane.b32.xlu0 %v446, 32
  %v450 = vpop.permute.xlu0 %449
  %v451 = vmul.f32 %v446, %v448
  %452 = vrot.lane.b32.xlu0 %v446, 96
  %v453 = vpop.permute.xlu0 %452
  %v454 = vmul.f32 %v453, %v367
  %v455 = vadd.f32 %v454, %v451
  %v456 = vtanh.pop %v455
  %v457 = vmul.f32 %v450, %v456
  %v459 = vsel %vm193, %v457, 0
  %461 = vmatprep.subr.mxu0 0.0
  %462 = vmatpush1.msra.mxu0 %v172
  %463 = vmatprep.subr.mxu0 0.0
  %464 = vmatpush1.msra.mxu0 %v173
  %465 = vmatprep.subr.mxu0 0.0
  %466 = vmatpush1.msra.mxu0 %v174
  %467 = vmatprep.subr.mxu0 0.0
  %468 = vmatpush1.msra.mxu0 %v175
  %469 = vmatprep.subr.mxu0 0.0
  %470 = vmatpush1.msra.mxu0 0.0
  %471 = vmatprep.subr.mxu0 0.0
  %472 = vmatpush1.msra.mxu0 0.0
  %473 = vmatprep.subr.mxu0 0.0
  %474 = vmatpush1.msra.mxu0 0.0
  %475 = vmatprep.subr.mxu0 0.0
  %476 = vmatpush1.msra.mxu0 0.0
  %477 = vmatprep.subr.mxu0 0.0
  %478 = vmatpush1.msra.mxu0 0.0
  %479 = vmatprep.subr.mxu0 0.0
  %480 = vmatpush1.msra.mxu0 0.0
  %481 = vmatprep.subr.mxu0 0.0
  %482 = vmatpush1.msra.mxu0 0.0
  %483 = vmatprep.subr.mxu0 0.0
  %484 = vmatpush1.msra.mxu0 0.0
  %485 = vmatprep.subr.mxu0 0.0
  %486 = vmatpush1.msra.mxu0 0.0
  %487 = vmatprep.subr.mxu0 0.0
  %488 = vmatpush1.msra.mxu0 0.0
  %489 = vmatprep.subr.mxu0 0.0
  %490 = vmatpush1.msra.mxu0 0.0
  %491 = vmatprep.subr.mxu0 0.0
  %492 = vmatpush1.msra.mxu0 0.0
  %493 = vmatprep.subr.mxu0 0.0
  %494 = vmatpush1.msra.mxu0 0.0
  %495 = vmatprep.subr.mxu0 0.0
  %496 = vmatpush1.msra.mxu0 0.0
  %497 = vmatprep.subr.mxu0 0.0
  %498 = vmatpush1.msra.mxu0 0.0
  %499 = vmatprep.subr.mxu0 0.0
  %500 = vmatpush1.msra.mxu0 0.0
  %501 = vmatprep.subr.mxu0 0.0
  %502 = vmatpush1.msra.mxu0 0.0
  %503 = vmatprep.subr.mxu0 0.0
  %504 = vmatpush1.msra.mxu0 0.0
  %505 = vmatprep.subr.mxu0 0.0
  %506 = vmatpush1.msra.mxu0 0.0
  %507 = vmatprep.subr.mxu0 0.0
  %508 = vmatpush1.msra.mxu0 0.0
  %509 = vmatprep.subr.mxu0 0.0
  %510 = vmatpush1.msra.mxu0 0.0
  %511 = vmatprep.subr.mxu0 0.0
  %512 = vmatpush1.msra.mxu0 0.0
  %513 = vmatprep.subr.mxu0 0.0
  %514 = vmatpush1.msra.mxu0 0.0
  %515 = vmatprep.subr.mxu0 0.0
  %516 = vmatpush1.msra.mxu0 0.0
  %517 = vmatprep.subr.mxu0 0.0
  %518 = vmatpush1.msra.mxu0 0.0
  %519 = vmatprep.subr.mxu0 0.0
  %520 = vmatpush1.msra.mxu0 0.0
  %521 = vmatprep.subr.mxu0 0.0
  %522 = vmatpush1.msra.mxu0 0.0
  %523 = vmatprep.subr.mxu0 0.0
  %524 = vmatpush1.msra.mxu0 0.0
  %525 = vmatprep.mubr.f32.mxu0 0.0
  %526 = vmatmul.mubr.f32.gmra.mrb[0].mxu0 %v459
  %v527 = vpop.f32.mrb[0].mxu0
  %v528 = vadd.f32 0.0, %v527
  %v529 = vpop.f32.mrb[0].mxu0
  %530 = vdwg.mxu0
  %v531 = vadd.f32 %v154, %v528
  %v532 = vtanh.pop %v531
  %v533 = vmul.f32 %v532, %v181
  %v534 = vadd.f32 %v533, %v182
  %535 = vrot.lane.b32.xlu0 %v534, 64
  %v536 = vpop.permute.xlu0 %535
  %537 = vrot.lane.b32.xlu0 %v534, 32
  %v538 = vpop.permute.xlu0 %537
  %v539 = vmul.f32 %v534, %v536
  %540 = vrot.lane.b32.xlu0 %v534, 96
  %v541 = vpop.permute.xlu0 %540
  %v542 = vmul.f32 %v541, %v455
  %v543 = vadd.f32 %v542, %v539
  %v544 = vtanh.pop %v543
  %v545 = vmul.f32 %v538, %v544
  %v547 = vsel %vm193, %v545, 0
  %549 = vmatprep.subr.mxu0 0.0
  %550 = vmatpush1.msra.mxu0 %v172
  %551 = vmatprep.subr.mxu0 0.0
  %552 = vmatpush1.msra.mxu0 %v173
  %553 = vmatprep.subr.mxu0 0.0
  %554 = vmatpush1.msra.mxu0 %v174
  %555 = vmatprep.subr.mxu0 0.0
  %556 = vmatpush1.msra.mxu0 %v175
  %557 = vmatprep.subr.mxu0 0.0
  %558 = vmatpush1.msra.mxu0 0.0
  %559 = vmatprep.subr.mxu0 0.0
  %560 = vmatpush1.msra.mxu0 0.0
  %561 = vmatprep.subr.mxu0 0.0
  %562 = vmatpush1.msra.mxu0 0.0
  %563 = vmatprep.subr.mxu0 0.0
  %564 = vmatpush1.msra.mxu0 0.0
  %565 = vmatprep.subr.mxu0 0.0
  %566 = vmatpush1.msra.mxu0 0.0
  %567 = vmatprep.subr.mxu0 0.0
  %568 = vmatpush1.msra.mxu0 0.0
  %569 = vmatprep.subr.mxu0 0.0
  %570 = vmatpush1.msra.mxu0 0.0
  %571 = vmatprep.subr.mxu0 0.0
  %572 = vmatpush1.msra.mxu0 0.0
  %573 = vmatprep.subr.mxu0 0.0
  %574 = vmatpush1.msra.mxu0 0.0
  %575 = vmatprep.subr.mxu0 0.0
  %576 = vmatpush1.msra.mxu0 0.0
  %577 = vmatprep.subr.mxu0 0.0
  %578 = vmatpush1.msra.mxu0 0.0
  %579 = vmatprep.subr.mxu0 0.0
  %580 = vmatpush1.msra.mxu0 0.0
  %581 = vmatprep.subr.mxu0 0.0
  %582 = vmatpush1.msra.mxu0 0.0
  %583 = vmatprep.subr.mxu0 0.0
  %584 = vmatpush1.msra.mxu0 0.0
  %585 = vmatprep.subr.mxu0 0.0
  %586 = vmatpush1.msra.mxu0 0.0
  %587 = vmatprep.subr.mxu0 0.0
  %588 = vmatpush1.msra.mxu0 0.0
  %589 = vmatprep.subr.mxu0 0.0
  %590 = vmatpush1.msra.mxu0 0.0
  %591 = vmatprep.subr.mxu0 0.0
  %592 = vmatpush1.msra.mxu0 0.0
  %593 = vmatprep.subr.mxu0 0.0
  %594 = vmatpush1.msra.mxu0 0.0
  %595 = vmatprep.subr.mxu0 0.0
  %596 = vmatpush1.msra.mxu0 0.0
  %597 = vmatprep.subr.mxu0 0.0
  %598 = vmatpush1.msra.mxu0 0.0
  %599 = vmatprep.subr.mxu0 0.0
  %600 = vmatpush1.msra.mxu0 0.0
  %601 = vmatprep.subr.mxu0 0.0
  %602 = vmatpush1.msra.mxu0 0.0
  %603 = vmatprep.subr.mxu0 0.0
  %604 = vmatpush1.msra.mxu0 0.0
  %605 = vmatprep.subr.mxu0 0.0
  %606 = vmatpush1.msra.mxu0 0.0
  %607 = vmatprep.subr.mxu0 0.0
  %608 = vmatpush1.msra.mxu0 0.0
  %609 = vmatprep.subr.mxu0 0.0
  %610 = vmatpush1.msra.mxu0 0.0
  %611 = vmatprep.subr.mxu0 0.0
  %612 = vmatpush1.msra.mxu0 0.0
  %613 = vmatprep.mubr.f32.mxu0 0.0
  %614 = vmatmul.mubr.f32.gmra.mrb[0].mxu0 %v547
  %v615 = vpop.f32.mrb[0].mxu0
  %v616 = vadd.f32 0.0, %v615
  %v617 = vpop.f32.mrb[0].mxu0
  %618 = vdwg.mxu0
  %v619 = vadd.f32 %v159, %v616
  %v620 = vtanh.pop %v619
  %v621 = vmul.f32 %v620, %v181
  %v622 = vadd.f32 %v621, %v182
  %623 = vrot.lane.b32.xlu0 %v622, 64
  %v624 = vpop.permute.xlu0 %623
  %625 = vrot.lane.b32.xlu0 %v622, 32
  %v626 = vpop.permute.xlu0 %625
  %v627 = vmul.f32 %v622, %v624
  %628 = vrot.lane.b32.xlu0 %v622, 96
  %v629 = vpop.permute.xlu0 %628
  %v630 = vmul.f32 %v629, %v543
  %v631 = vadd.f32 %v630, %v627
  %v632 = vtanh.pop %v631
  %v633 = vmul.f32 %v626, %v632
  %v635 = vsel %vm193, %v633, 0
  %637 = vmatprep.subr.mxu0 0.0
  %638 = vmatpush1.msra.mxu0 %v172
  %639 = vmatprep.subr.mxu0 0.0
  %640 = vmatpush1.msra.mxu0 %v173
  %641 = vmatprep.subr.mxu0 0.0
  %642 = vmatpush1.msra.mxu0 %v174
  %643 = vmatprep.subr.mxu0 0.0
  %644 = vmatpush1.msra.mxu0 %v175
  %645 = vmatprep.subr.mxu0 0.0
  %646 = vmatpush1.msra.mxu0 0.0
  %647 = vmatprep.subr.mxu0 0.0
  %648 = vmatpush1.msra.mxu0 0.0
  %649 = vmatprep.subr.mxu0 0.0
  %650 = vmatpush1.msra.mxu0 0.0
  %651 = vmatprep.subr.mxu0 0.0
  %652 = vmatpush1.msra.mxu0 0.0
  %653 = vmatprep.subr.mxu0 0.0
  %654 = vmatpush1.msra.mxu0 0.0
  %655 = vmatprep.subr.mxu0 0.0
  %656 = vmatpush1.msra.mxu0 0.0
  %657 = vmatprep.subr.mxu0 0.0
  %658 = vmatpush1.msra.mxu0 0.0
  %659 = vmatprep.subr.mxu0 0.0
  %660 = vmatpush1.msra.mxu0 0.0
  %661 = vmatprep.subr.mxu0 0.0
  %662 = vmatpush1.msra.mxu0 0.0
  %663 = vmatprep.subr.mxu0 0.0
  %664 = vmatpush1.msra.mxu0 0.0
  %665 = vmatprep.subr.mxu0 0.0
  %666 = vmatpush1.msra.mxu0 0.0
  %667 = vmatprep.subr.mxu0 0.0
  %668 = vmatpush1.msra.mxu0 0.0
  %669 = vmatprep.subr.mxu0 0.0
  %670 = vmatpush1.msra.mxu0 0.0
  %671 = vmatprep.subr.mxu0 0.0
  %672 = vmatpush1.msra.mxu0 0.0
  %673 = vmatprep.subr.mxu0 0.0
  %674 = vmatpush1.msra.mxu0 0.0
  %675 = vmatprep.subr.mxu0 0.0
  %676 = vmatpush1.msra.mxu0 0.0
  %677 = vmatprep.subr.mxu0 0.0
  %678 = vmatpush1.msra.mxu0 0.0
  %679 = vmatprep.subr.mxu0 0.0
  %680 = vmatpush1.msra.mxu0 0.0
  %681 = vmatprep.subr.mxu0 0.0
  %682 = vmatpush1.msra.mxu0 0.0
  %683 = vmatprep.subr.mxu0 0.0
  %684 = vmatpush1.msra.mxu0 0.0
  %685 = vmatprep.subr.mxu0 0.0
  %686 = vmatpush1.msra.mxu0 0.0
  %687 = vmatprep.subr.mxu0 0.0
  %688 = vmatpush1.msra.mxu0 0.0
  %689 = vmatprep.subr.mxu0 0.0
  %690 = vmatpush1.msra.mxu0 0.0
  %691 = vmatprep.subr.mxu0 0.0
  %692 = vmatpush1.msra.mxu0 0.0
  %693 = vmatprep.subr.mxu0 0.0
  %694 = vmatpush1.msra.mxu0 0.0
  %695 = vmatprep.subr.mxu0 0.0
  %696 = vmatpush1.msra.mxu0 0.0
  %697 = vmatprep.subr.mxu0 0.0
  %698 = vmatpush1.msra.mxu0 0.0
  %699 = vmatprep.subr.mxu0 0.0
  %700 = vmatpush1.msra.mxu0 0.0
  %701 = vmatprep.mubr.f32.mxu0 0.0
  %702 = vmatmul.mubr.f32.gmra.mrb[0].mxu0 %v635
  %v703 = vpop.f32.mrb[0].mxu0
  %v704 = vadd.f32 0.0, %v703
  %v705 = vpop.f32.mrb[0].mxu0
  %706 = vdwg.mxu0
  %v707 = vadd.f32 %v164, %v704
  %v708 = vtanh.pop %v707
  %v709 = vmul.f32 %v708, %v181
  %v710 = vadd.f32 %v709, %v182
  %711 = vrot.lane.b32.xlu0 %v710, 64
  %v712 = vpop.permute.xlu0 %711
  %713 = vrot.lane.b32.xlu0 %v710, 32
  %v714 = vpop.permute.xlu0 %713
  %v715 = vmul.f32 %v710, %v712
  %716 = vrot.lane.b32.xlu0 %v710, 96
  %v717 = vpop.permute.xlu0 %716
  %v718 = vmul.f32 %v717, %v631
  %v719 = vadd.f32 %v718, %v715
  %v720 = vtanh.pop %v719
  %v721 = vmul.f32 %v714, %v720
  %v723 = vsel %vm193, %v721, 0
  %725 = vmatprep.subr.mxu0 0.0
  %726 = vmatpush1.msra.mxu0 %v172
  %727 = vmatprep.subr.mxu0 0.0
  %728 = vmatpush1.msra.mxu0 %v173
  %729 = vmatprep.subr.mxu0 0.0
  %730 = vmatpush1.msra.mxu0 %v174
  %731 = vmatprep.subr.mxu0 0.0
  %732 = vmatpush1.msra.mxu0 %v175
  %733 = vmatprep.subr.mxu0 0.0
  %734 = vmatpush1.msra.mxu0 0.0
  %735 = vmatprep.subr.mxu0 0.0
  %736 = vmatpush1.msra.mxu0 0.0
  %737 = vmatprep.subr.mxu0 0.0
  %738 = vmatpush1.msra.mxu0 0.0
  %739 = vmatprep.subr.mxu0 0.0
  %740 = vmatpush1.msra.mxu0 0.0
  %741 = vmatprep.subr.mxu0 0.0
  %742 = vmatpush1.msra.mxu0 0.0
  %743 = vmatprep.subr.mxu0 0.0
  %744 = vmatpush1.msra.mxu0 0.0
  %745 = vmatprep.subr.mxu0 0.0
  %746 = vmatpush1.msra.mxu0 0.0
  %747 = vmatprep.subr.mxu0 0.0
  %748 = vmatpush1.msra.mxu0 0.0
  %749 = vmatprep.subr.mxu0 0.0
  %750 = vmatpush1.msra.mxu0 0.0
  %751 = vmatprep.subr.mxu0 0.0
  %752 = vmatpush1.msra.mxu0 0.0
  %753 = vmatprep.subr.mxu0 0.0
  %754 = vmatpush1.msra.mxu0 0.0
  %755 = vmatprep.subr.mxu0 0.0
  %756 = vmatpush1.msra.mxu0 0.0
  %757 = vmatprep.subr.mxu0 0.0
  %758 = vmatpush1.msra.mxu0 0.0
  %759 = vmatprep.subr.mxu0 0.0
  %760 = vmatpush1.msra.mxu0 0.0
  %761 = vmatprep.subr.mxu0 0.0
  %762 = vmatpush1.msra.mxu0 0.0
  %763 = vmatprep.subr.mxu0 0.0
  %764 = vmatpush1.msra.mxu0 0.0
  %765 = vmatprep.subr.mxu0 0.0
  %766 = vmatpush1.msra.mxu0 0.0
  %767 = vmatprep.subr.mxu0 0.0
  %768 = vmatpush1.msra.mxu0 0.0
  %769 = vmatprep.subr.mxu0 0.0
  %770 = vmatpush1.msra.mxu0 0.0
  %771 = vmatprep.subr.mxu0 0.0
  %772 = vmatpush1.msra.mxu0 0.0
  %773 = vmatprep.subr.mxu0 0.0
  %774 = vmatpush1.msra.mxu0 0.0
  %775 = vmatprep.subr.mxu0 0.0
  %776 = vmatpush1.msra.mxu0 0.0
  %777 = vmatprep.subr.mxu0 0.0
  %778 = vmatpush1.msra.mxu0 0.0
  %779 = vmatprep.subr.mxu0 0.0
  %780 = vmatpush1.msra.mxu0 0.0
  %781 = vmatprep.subr.mxu0 0.0
  %782 = vmatpush1.msra.mxu0 0.0
  %783 = vmatprep.subr.mxu0 0.0
  %784 = vmatpush1.msra.mxu0 0.0
  %785 = vmatprep.subr.mxu0 0.0
  %786 = vmatpush1.msra.mxu0 0.0
  %787 = vmatprep.subr.mxu0 0.0
  %788 = vmatpush1.msra.mxu0 0.0
  %789 = vmatprep.mubr.f32.mxu0 0.0
  %790 = vmatmul.mubr.f32.gmra.mrb[0].mxu0 %v723
  %v791 = vpop.f32.mrb[0].mxu0
  %v792 = vadd.f32 0.0, %v791
  %v793 = vpop.f32.mrb[0].mxu0
  %794 = vdwg.mxu0
  %v795 = vadd.f32 %v169, %v792
  %v796 = vtanh.pop %v795
  %v797 = vmul.f32 %v796, %v181
  %v798 = vadd.f32 %v797, %v182
  %799 = vrot.lane.b32.xlu0 %v798, 64
  %v800 = vpop.permute.xlu0 %799
  %801 = vrot.lane.b32.xlu0 %v798, 32
  %v802 = vpop.permute.xlu0 %801
  %v803 = vmul.f32 %v798, %v800
  %804 = vrot.lane.b32.xlu0 %v798, 96
  %v805 = vpop.permute.xlu0 %804
  %v806 = vmul.f32 %v805, %v719
  %v807 = vadd.f32 %v806, %v803
  %v808 = vtanh.pop %v807
  %v809 = vmul.f32 %v802, %v808
  %v810 = vld [vmem:[%s4] sm:$0x1]
  %v812 = vlaneseq
  %v813 = vshrl.u32 %v812, 7
  %v814 = vsub.s32 0, %v813
  %v815 = vrot.slane %v810, %v814
  %v817 = vmul.f32 %v809, %v815
  %v818 = vsel %vm193, %v817, 0.0
  %819 = vadd.xlane.f32.xlu0 %v818
  %v820 = vpop.xlane.xlu0 %819
  %v821 = vld [vmem:[#allocation2] sm:$0x1]
  %v823 = vlaneseq
  %v824 = vshrl.u32 %v823, 7
  %v825 = vsub.s32 0, %v824
  %v826 = vrot.slane %v821, %v825
  %v828 = vadd.f32 %v820, %v826
  %vm829 = vcmask 7168
  %830 = vst.msk [vmem:[%s6] sm:$0xff] %vm829, %v828
  // Predicated region
  $region26: #{tpu_custom_call.1} parent=0 // pred_check
    _
  $region27: #{tpu_custom_call.1} parent=0 // pred_check_branch
    %832 = sbr.rel (0) target = $region29
  $region28: #{tpu_custom_call.1} parent=0 // pred_region
    _
  $region29: #{tpu_custom_call.1} parent=0 // pred_fallthru
    _
  // Predicated region
  $region30: #{tpu_custom_call.1} parent=0 // pred_check
    _
  $region31: #{tpu_custom_call.1} parent=0 // pred_check_branch
    %834 = sbr.rel (0) target = $region33
  $region32: #{tpu_custom_call.1} parent=0 // pred_region
    _
  $region33: #{tpu_custom_call.1} parent=0 // pred_fallthru
    _

</llo_original>
